<compile_context>
chip_gen: v5e
topology: v5e:2x2
jax: 0.10.0
libtpu: 0.0.40
codegen_flags: <defaults>
</compile_context>

<pallas_src>
import functools
import math

import jax
import jax.numpy as jnp
from jax.experimental import pallas as pl
from jax.experimental.pallas import tpu as pltpu

_LANES = 128
_SUBLANES = 8
_CHUNK_ROWS = 1024                # (1024, 128) f32 chunk = 512 KiB live temps
_LN50 = math.log(50.0)            # hoisted: 50**gt == exp(gt * ln 50)


def _round_up(x, m):
    return -(-x // m) * m


def _cdiv(a, b):
    return -(-a // b)


def _sublane_align(dtype):
    # Packed dtypes tile along sublanes: f32 -> 8, bf16/f16 -> 16, int8/fp8 -> 32.
    return {4: 8, 2: 16, 1: 32}.get(jnp.dtype(dtype).itemsize, 8)


def _tpu_kind():
    try:
        dev = jax.devices()[0]
        if dev.platform != "tpu":
            return ""
        return dev.device_kind.lower()
    except Exception:
        return ""


def _fold_block(pred_ref, gt_ref, block_rows, chunk_rows, *,
                row_offset=None, valid_rows=None, unroll=True):
    """Fold (pred-gt)^2 * 50**gt over the resident block into an (8,128) f32 sum.

    If `valid_rows` is given, rows with absolute index >= valid_rows are dropped
    via jnp.where (NOT a multiply, so garbage NaN/Inf past the array end is safe).
    """
    num_chunks = block_rows // chunk_rows
    masked = valid_rows is not None

    def chunk_sum(p, g, abs_row0):
        p = p.astype(jnp.float32)
        g = g.astype(jnp.float32)
        diff = p - g
        contrib = diff * diff * jnp.exp(g * _LN50)    # exp runs on the EUP slot
        if masked:
            row_ids = abs_row0 + jax.lax.broadcasted_iota(
                jnp.int32, (chunk_rows, _LANES), 0)
            contrib = jnp.where(row_ids < valid_rows, contrib, 0.0)
        # Pure VPU vreg adds; no cross-lane (XLU) reduce on the hot path.
        return jnp.sum(
            contrib.reshape(chunk_rows // _SUBLANES, _SUBLANES, _LANES), axis=0)

    if num_chunks == 1:
        return chunk_sum(pred_ref[...], gt_ref[...],
                         row_offset if masked else 0)

    def body(j, acc):
        start = pl.multiple_of(j * chunk_rows, chunk_rows)
        p = pred_ref[pl.ds(start, chunk_rows), :]
        g = gt_ref[pl.ds(start, chunk_rows), :]
        abs_row0 = (row_offset + j * chunk_rows) if masked else 0
        return acc + chunk_sum(p, g, abs_row0)

    return jax.lax.fori_loop(
        0, num_chunks, body,
        jnp.zeros((_SUBLANES, _LANES), jnp.float32), unroll=unroll)


def _mse_weight_kernel(pred_ref, gt_ref, out_ref, *, block_rows, chunk_rows,
                       valid_rows, num_blocks, blocks_per_split,
                       tail_partial, has_ghost):
    c = pl.program_id(0)          # TensorCore split ("parallel", size 1 or 2)
    i = pl.program_id(1)          # row-block reduction loop ("arbitrary")

    # out_ref is the (8,128) accumulator, resident across the inner axis.
    @pl.when(i == 0)
    def _():
        out_ref[...] = jnp.zeros_like(out_ref)

    blk = c * blocks_per_split + i

    def add_unmasked():
        out_ref[...] += _fold_block(pred_ref, gt_ref, block_rows, chunk_rows,
                                    unroll=True)

    def add_masked_tail():
        out_ref[...] += _fold_block(pred_ref, gt_ref, block_rows, chunk_rows,
                                    row_offset=blk * block_rows,
                                    valid_rows=valid_rows, unroll=False)

    if not tail_partial and not has_ghost:
        # Every block is full and real: single unmasked path, zero mask cost.
        add_unmasked()
    elif tail_partial:
        # Interior blocks unmasked; only the real tail block pays the mask;
        # ghost blocks (blk >= num_blocks, from split rounding) do nothing.
        pl.when(blk < num_blocks - 1)(add_unmasked)
        pl.when(blk == num_blocks - 1)(add_masked_tail)
    else:
        # Tail is full but ghost blocks exist: just skip the ghosts.
        pl.when(blk < num_blocks)(add_unmasked)


def mse_weight(pred, gt):
    """Weighted MSE: mean((pred - gt)^2 * 50**gt), matching MseWight.forward."""
    assert pred.shape == gt.shape
    total_n = int(pred.size)

    p = jnp.ravel(pred)
    g = jnp.ravel(gt)

    # Only pad when the flat length is not 128-divisible (rare); padded zeros
    # contribute exactly 0.  No dtype cast here: blocks stream in the source
    # dtype (bf16 stays bf16 in HBM) and are upcast in-register in the kernel.
    if total_n % _LANES != 0:
        pad = _LANES - total_n % _LANES
        p = jnp.pad(p, (0, pad))
        g = jnp.pad(g, (0, pad))
    rows = _cdiv(total_n, _LANES)

    p2 = p.reshape(rows, _LANES)
    g2 = g.reshape(rows, _LANES)

    # ---- chip-dependent tiling -------------------------------------------
    kind = _tpu_kind()
    is_v5 = "v5" in kind
    two_tc = "v7" in kind          # only v7x-class exposes 2 TCs to one kernel
    max_block_rows = 4096 if is_v5 else 8192   # 2 / 4 MiB f32 per input per block

    row_align = max(_sublane_align(p2.dtype), _sublane_align(g2.dtype))
    if rows >= max_block_rows:
        block_rows = max_block_rows
        chunk_rows = _CHUNK_ROWS
    elif rows >= _CHUNK_ROWS:
        block_rows = (rows // _CHUNK_ROWS) * _CHUNK_ROWS
        chunk_rows = _CHUNK_ROWS
    else:
        block_rows = _round_up(rows, row_align)
        chunk_rows = block_rows

    num_blocks = _cdiv(rows, block_rows)
    num_splits = 2 if (two_tc and num_blocks >= 2) else 1
    bpc = _cdiv(num_blocks, num_splits)               # blocks per core
    has_ghost = num_splits * bpc != num_blocks        # split-rounding ghosts
    tail_partial = num_blocks * block_rows != rows    # partial tail block

    if has_ghost:
        # Clamp so ghost-block DMAs stay in range; the kernel skips their add.
        def in_map(c, i):
            return (jnp.minimum(c * bpc + i, num_blocks - 1), 0)
    else:
        def in_map(c, i):
            return (c * bpc + i, 0)

    kernel = functools.partial(
        _mse_weight_kernel,
        block_rows=block_rows,
        chunk_rows=chunk_rows,
        valid_rows=rows,
        num_blocks=num_blocks,
        blocks_per_split=bpc,
        tail_partial=tail_partial,
        has_ghost=has_ghost,
    )

    # Double-buffered inputs + ~2 MiB chunk temporaries + headroom.
    block_bytes = block_rows * _LANES * (p2.dtype.itemsize + g2.dtype.itemsize)
    vmem_limit = int(min(48 << 20, 2 * block_bytes + (16 << 20)))

    cost = pl.CostEstimate(
        flops=7 * total_n,
        transcendentals=total_n,
        bytes_accessed=int(p2.size * p2.dtype.itemsize
                           + g2.size * g2.dtype.itemsize
                           + num_splits * _SUBLANES * _LANES * 4),
    )

    partials = pl.pallas_call(
        kernel,
        out_shape=jax.ShapeDtypeStruct((num_splits, _SUBLANES, _LANES),
                                       jnp.float32),
        grid=(num_splits, bpc),
        in_specs=[
            pl.BlockSpec((block_rows, _LANES), in_map),
            pl.BlockSpec((block_rows, _LANES), in_map),
        ],
        out_specs=pl.BlockSpec((None, _SUBLANES, _LANES),
                               lambda c, i: (c, 0, 0)),
        compiler_params=pltpu.CompilerParams(
            dimension_semantics=("parallel", "arbitrary"),
            vmem_limit_bytes=vmem_limit),
        cost_estimate=cost,
    )(p2, g2)

    # Single tiny cross-lane reduce + mean, once, outside the hot loop.
    return jnp.sum(partials) / jnp.float32(total_n)


if __name__ == "__main__":
    key = jax.random.PRNGKey(0)
    k1, k2 = jax.random.split(key)
    pred = jax.random.normal(k1, (2, 4, 16, 16), dtype=jnp.float32)
    gt = jax.random.uniform(k2, (2, 4, 16, 16), dtype=jnp.float32)

    loss = mse_weight(pred, gt)
    jax.block_until_ready(loss)

    # reference check (plain JAX)
    ref = jnp.mean((pred - gt) ** 2 * jnp.power(50.0, gt))
    assert jnp.allclose(loss, ref, rtol=1e-5, atol=1e-5), (loss, ref)

    print("KERNEL_OK")
</pallas_src>

<mosaic_0001>
module attributes {stable_mosaic.version = 11 : i64} {
  func.func @_mse_weight_kernel(%arg0: i32, %arg1: i32, %arg2: memref<16x128xf32, #tpu.memory_space<vmem>>, %arg3: memref<16x128xf32, #tpu.memory_space<vmem>>, %arg4: memref<1x8x128xf32, #tpu.memory_space<vmem>>) attributes {dimension_semantics = [#tpu.dimension_semantics<parallel>, #tpu.dimension_semantics<arbitrary>], iteration_bounds = array<i64: 1, 1>, scalar_prefetch = 0 : i64, scratch_operands = 0 : i64, tpu.core_type = #tpu.core_type<tc>, window_params = [{transform_indices = @transform_0, window_bounds = array<i64: 16, 128>}, {transform_indices = @transform_1, window_bounds = array<i64: 16, 128>}, {transform_indices = @transform_2, window_bounds = array<i64: 1, 8, 128>}]} {
    %c0_i32 = arith.constant 0 : i32
    %0 = arith.cmpi eq, %arg1, %c0_i32 : i32
    %1 = arith.extui %0 : i1 to i32
    %c0_i32_0 = arith.constant 0 : i32
    %2 = arith.cmpi ne, %1, %c0_i32_0 : i32
    scf.if %2 {
      %cst_11 = arith.constant 0.000000e+00 : f32
      %19 = vector.broadcast %cst_11 : f32 to vector<8x128xf32>
      %c0_12 = arith.constant 0 : index
      %c0_13 = arith.constant 0 : index
      %c0_14 = arith.constant 0 : index
      %20 = vector.load %arg4[%c0_12, %c0_13, %c0_14] : memref<1x8x128xf32, #tpu.memory_space<vmem>>, vector<1x8x128xf32>
      %21 = vector.shape_cast %20 : vector<1x8x128xf32> to vector<8x128xf32>
      %22 = vector.shape_cast %19 : vector<8x128xf32> to vector<1x8x128xf32>
      tpu.vector_store %arg4[%c0_12, %c0_13, %c0_14], %22 {strides = array<i32>} : memref<1x8x128xf32, #tpu.memory_space<vmem>>, vector<1x8x128xf32>,
    } else {
    }
    %c0 = arith.constant 0 : index
    %c0_1 = arith.constant 0 : index
    %c0_2 = arith.constant 0 : index
    %3 = vector.load %arg4[%c0, %c0_1, %c0_2] : memref<1x8x128xf32, #tpu.memory_space<vmem>>, vector<1x8x128xf32>
    %4 = vector.shape_cast %3 : vector<1x8x128xf32> to vector<8x128xf32>
    %c0_3 = arith.constant 0 : index
    %c0_4 = arith.constant 0 : index
    %5 = vector.load %arg2[%c0_3, %c0_4] : memref<16x128xf32, #tpu.memory_space<vmem>>, vector<16x128xf32>
    %c0_5 = arith.constant 0 : index
    %c0_6 = arith.constant 0 : index
    %6 = vector.load %arg3[%c0_5, %c0_6] : memref<16x128xf32, #tpu.memory_space<vmem>>, vector<16x128xf32>
    %7 = arith.subf %5, %6 : vector<16x128xf32>
    %8 = arith.mulf %7, %7 : vector<16x128xf32>
    %cst = arith.constant 3.91202307 : f32
    %9 = vector.broadcast %cst : f32 to vector<16x128xf32>
    %10 = arith.mulf %6, %9 : vector<16x128xf32>
    %11 = math.exp %10 : vector<16x128xf32>
    %12 = arith.mulf %8, %11 : vector<16x128xf32>
    %13 = vector.shape_cast %12 : vector<16x128xf32> to vector<2x8x128xf32>
    %cst_7 = arith.constant dense<0.000000e+00> : vector<8x128xf32>
    %14 = vector.multi_reduction <add>, %13, %cst_7 [0] : vector<2x8x128xf32> to vector<8x128xf32>
    %15 = arith.addf %4, %14 : vector<8x128xf32>
    %c0_8 = arith.constant 0 : index
    %c0_9 = arith.constant 0 : index
    %c0_10 = arith.constant 0 : index
    %16 = vector.load %arg4[%c0_8, %c0_9, %c0_10] : memref<1x8x128xf32, #tpu.memory_space<vmem>>, vector<1x8x128xf32>
    %17 = vector.shape_cast %16 : vector<1x8x128xf32> to vector<8x128xf32>
    %18 = vector.shape_cast %15 : vector<8x128xf32> to vector<1x8x128xf32>
    tpu.vector_store %arg4[%c0_8, %c0_9, %c0_10], %18 {strides = array<i32>} : memref<1x8x128xf32, #tpu.memory_space<vmem>>, vector<1x8x128xf32>,
    return
  }
  func.func @transform_0(%arg0: i32, %arg1: i32) -> (i32, i32) {
    %c1_i32 = arith.constant 1 : i32
    %0 = arith.muli %arg0, %c1_i32 : i32
    %1 = arith.addi %0, %arg1 : i32
    %c0_i32 = arith.constant 0 : i32
    %c0_i32_0 = arith.constant 0 : i32
    return %1, %c0_i32 : i32, i32
  }
  func.func @transform_1(%arg0: i32, %arg1: i32) -> (i32, i32) {
    %c1_i32 = arith.constant 1 : i32
    %0 = arith.muli %arg0, %c1_i32 : i32
    %1 = arith.addi %0, %arg1 : i32
    %c0_i32 = arith.constant 0 : i32
    %c0_i32_0 = arith.constant 0 : i32
    return %1, %c0_i32 : i32, i32
  }
  func.func @transform_2(%arg0: i32, %arg1: i32) -> (i32, i32, i32) {
    %c0_i32 = arith.constant 0 : i32
    %c0_i32_0 = arith.constant 0 : i32
    %c0_i32_1 = arith.constant 0 : i32
    return %arg0, %c0_i32, %c0_i32_0 : i32, i32, i32
  }
}

</mosaic_0001>

<llo_original>
// kernel: tpu_custom_call.1
$region0: #{tpu_custom_call.1}
  #allocation0 [shape = 'u32[]', space=smem, size = 0x4, offset = 0x4, fixed_abs, tag = 'smem constant byte address 0x4 - core index']
  #allocation1 [shape = 'u32[72,128]{1,0:T(1,128)}', space=vmem, size = 0x9000, scoped, tag = 'internal scratch']
  %s0 = inlined_call_operand.hbm [shape: f32[16,128], index: 0, kind: input, shape index: {}]
  %s1 = inlined_call_operand.hbm [shape: f32[16,128], index: 1, kind: input, shape index: {}]
  %s2 = inlined_call_operand.hbm [shape: f32[1,8,128], index: 2, kind: output, shape index: {}]
  %s3 = sld [smem:[#allocation0]]
  $region30: #{tpu_custom_call.1} parent=0
    _
  %s5 = ssub.s32 1, %s3
  %s6 = scalar_select 0, %s5, %s3
  $region1: #{tpu_custom_call.1} parent=0
    #allocation2 [shape = 'u8[8192]{0}', space=vmem, size = 0x2000, scoped, tag = 'input window, operand 0, single buffered']
    #allocation3 [shape = 's32[1]{0}', space=sflag, size = 0x4, scoped, tag = 'scoped memory for tpu_custom_call.1']
    #allocation4 [shape = 's32[1]{0}', space=sflag, size = 0x4, scoped, tag = 'scoped memory for tpu_custom_call.1']
    #allocation5 [shape = 'u8[8192]{0}', space=vmem, size = 0x2000, scoped, tag = 'input window, operand 1, single buffered']
    #allocation6 [shape = 's32[1]{0}', space=sflag, size = 0x4, scoped, tag = 'scoped memory for tpu_custom_call.1']
    #allocation7 [shape = 'u8[4096]{0}', space=vmem, size = 0x1000, scoped, tag = 'output window, operand 0, single buffered']
    %7 = vsyncpa [#allocation3], 0
    %8 = vsyncpa [#allocation6], 0
    %9 = vsyncpa [#allocation4], 0
    // Predicated region
    $region2: #{tpu_custom_call.1} parent=1 // pred_check
      _
    $region3: #{tpu_custom_call.1} parent=1 // pred_check_branch
      %11 = sbr.rel (0) target = $region5
    $region4: #{tpu_custom_call.1} parent=1 // pred_region
      %s12 = sadd.s32 0, 0
      %s13 = smul.u32 2, %s12
      %15 = vsyncadd [#allocation3], 0
      %s16 = smul.addr %s13, 8
      %s17 = scalar_lea.hbm %s0, %s16
      %s18 = sshll.u32 %s17, 4
      %s19 = int_to_ptr.hbm [resolvable:$true] %s18
      %s20 = sshll.u32 [#allocation2], 4
      %s21 = int_to_ptr.vmem [resolvable:$true] %s20
      %26 = dma.hbm_to_vmem [thread:$0]  %s19, 256, %s21, [#allocation3], 128, 128, 8
    $region5: #{tpu_custom_call.1} parent=1 // pred_fallthru
      _
    // Predicated region
    $region6: #{tpu_custom_call.1} parent=1 // pred_check
      _
    $region7: #{tpu_custom_call.1} parent=1 // pred_check_branch
      %28 = sbr.rel (0) target = $region9
    $region8: #{tpu_custom_call.1} parent=1 // pred_region
      %s29 = sadd.s32 0, 0
      %s30 = smul.u32 2, %s29
      %32 = vsyncadd [#allocation6], 0
      %s33 = smul.addr %s30, 8
      %s34 = scalar_lea.hbm %s1, %s33
      %s35 = sshll.u32 %s34, 4
      %s36 = int_to_ptr.hbm [resolvable:$true] %s35
      %s37 = sshll.u32 [#allocation5], 4
      %s38 = int_to_ptr.vmem [resolvable:$true] %s37
      %43 = dma.hbm_to_vmem [thread:$0]  %s36, 256, %s38, [#allocation6], 128, 128, 8
    $region9: #{tpu_custom_call.1} parent=1 // pred_fallthru
      _
    // Predicated region
    $region10: #{tpu_custom_call.1} parent=1 // pred_check
      _
    $region11: #{tpu_custom_call.1} parent=1 // pred_check_branch
      %45 = sbr.rel (0) target = $region13
    $region12: #{tpu_custom_call.1} parent=1 // pred_region
      %47 = dma.done [#allocation3], 256
    $region13: #{tpu_custom_call.1} parent=1 // pred_fallthru
      _
    // Predicated region
    $region14: #{tpu_custom_call.1} parent=1 // pred_check
      _
    $region15: #{tpu_custom_call.1} parent=1 // pred_check_branch
      %49 = sbr.rel (0) target = $region17
    $region16: #{tpu_custom_call.1} parent=1 // pred_region
      %51 = dma.done [#allocation6], 256
    $region17: #{tpu_custom_call.1} parent=1 // pred_fallthru
      _
    %s52 = sadd.s32 0, 0
    %s53 = smul.u32 2, %s52
    %s54 = sadd.s32 0, 0
    %s55 = smul.u32 2, %s54
    %p56 = scmp.eq.s32.totalorder 0, 0
    // Predicated region
    $region18: #{tpu_custom_call.1} parent=1 // pred_check
      %p57 = pneg %p56
    $region19: #{tpu_custom_call.1} parent=1 // pred_check_branch
      %59 = sbr.rel (%p57) target = $region21
    $region20: #{tpu_custom_call.1} parent=1 // pred_region
      %60 = vst [vmem:[#allocation7] sm:$0xff] 0.0
    $region21: #{tpu_custom_call.1} parent=1 // pred_fallthru
      _
    %v61 = vld [vmem:[#allocation7] sm:$0xff]
    %v62 = vld [vmem:[#allocation2] sm:$0xff]
    %v63 = vld [vmem:[#allocation2 + $0x8] sm:$0xff]
    %v64 = vld [vmem:[#allocation5] sm:$0xff]
    %v65 = vld [vmem:[#allocation5 + $0x8] sm:$0xff]
    %v66 = vsub.f32 %v62, %v64
    %v67 = vsub.f32 %v63, %v65
    %v68 = vmul.f32 %v66, %v66
    %v69 = vmul.f32 %v67, %v67
    %v70 = vmul.f32 %v64, 3.912023
    %v71 = vmul.f32 %v65, 3.912023
    %v72 = vmul.f32 %v70, 1.442695
    %v73 = vpow.pop %v72
    %v74 = vmul.f32 %v71, 1.442695
    %v75 = vpow.pop %v74
    %v76 = vmul.f32 %v68, %v73
    %v77 = vmul.f32 %v69, %v75
    %v78 = vadd.f32 %v76, %v77
    %v79 = vadd.f32 %v61, %v78
    %80 = vst [vmem:[#allocation7] sm:$0xff] %v79
    // Predicated region
    $region22: #{tpu_custom_call.1} parent=1 // pred_check
      _
    $region23: #{tpu_custom_call.1} parent=1 // pred_check_branch
      %82 = sbr.rel (0) target = $region25
    $region24: #{tpu_custom_call.1} parent=1 // pred_region
      %84 = vsyncadd [#allocation4], 0
      %s86 = sshll.u32 [#allocation7], 4
      %s87 = int_to_ptr.vmem [resolvable:$true] %s86
      %s88 = sshll.u32 %s2, 4
      %s89 = int_to_ptr.hbm [resolvable:$true] %s88
      %91 = dma.vmem_to_hbm [thread:$0]  %s87, 128, %s89, [#allocation4]
    $region25: #{tpu_custom_call.1} parent=1 // pred_fallthru
      _
    // Predicated region
    $region26: #{tpu_custom_call.1} parent=1 // pred_check
      _
    $region27: #{tpu_custom_call.1} parent=1 // pred_check_branch
      %93 = sbr.rel (0) target = $region29
    $region28: #{tpu_custom_call.1} parent=1 // pred_region
      %95 = dma.done [#allocation4], 128
    $region29: #{tpu_custom_call.1} parent=1 // pred_fallthru
      _
    %96 = vsyncpa [#allocation3], 1
    %97 = vsyncpa [#allocation6], 1
    %98 = vsyncpa [#allocation4], 1

</llo_original>
